<compile_context>
chip_gen: v7x
topology: tpu7x:2x2x1
jax: 0.10.0
libtpu: 0.0.40
codegen_flags: <defaults>
</compile_context>

<pallas_src>
import functools

import jax
import jax.numpy as jnp
from jax import lax
from jax.experimental import pallas as pl
from jax.experimental.pallas import tpu as pltpu

_MiB = 1024 * 1024


# ---------------------------------------------------------------------------
# Chip detection & generation-parameterized VMEM budgets.
# ---------------------------------------------------------------------------
def _tpu_info():
    """Returns (vmem_capacity_bytes, tensorcores_per_chip) with safe fallbacks."""
    vmem_cap = 128 * _MiB
    try:
        vmem_cap = int(pltpu.get_tpu_info().vmem_capacity_bytes)
    except Exception:
        pass
    kind = ""
    try:
        kind = jax.devices()[0].device_kind.lower()
    except Exception:
        pass
    # v7x: 64 MiB VMEM per TensorCore, 2 TensorCores per chip.
    is_v7x = ("7" in kind) or (0 < vmem_cap <= 80 * _MiB)
    return vmem_cap, (2 if is_v7x else 1)


def _budgets(M, itemsize, n_resident_mm):
    """Returns (vmem_limit_bytes, F_tile_budget_bytes, tensorcores_per_chip)."""
    vmem_cap, cores = _tpu_info()
    if vmem_cap <= 80 * _MiB:          # v7x-class: 64 MiB physical per TC
        vmem_limit = 52 * _MiB
    else:                              # v5e / v6e: 128 MiB physical
        vmem_limit = 96 * _MiB
    # VMEM not available to the double-buffered F tiles:
    #  * n_resident_mm (M, M) f32 blocks (f32 accumulator / output block /
    #    double-buffered resident target),
    #  * masked-remainder temporaries (a few (M, 128) f32 slabs),
    #  * ~4 MiB slop for compiler-internal scratch.
    fixed = n_resident_mm * M * M * 4 + 4 * M * 128 * 4 + 4 * _MiB
    f_budget = max(vmem_limit - fixed, 2 * _MiB)
    return vmem_limit, f_budget, cores


def _choose_tk(M, K, itemsize, f_budget):
    """Largest lane-aligned K tile such that (a) two buffers of the (M, tk)
    F tile fit the budget and (b) nk >= 2 whenever K allows it, so the F DMA
    and the MXU work can pipeline-overlap."""
    if K <= 128:
        return K                                   # single full-K block
    tk_vmem = (f_budget // (2 * M * itemsize)) // 128 * 128
    tk_two = ((K - 1) // 128) * 128                # largest tk giving nk >= 2
    return max(128, min(tk_vmem, tk_two))


# ---------------------------------------------------------------------------
# Shared accumulation step:  acc += F_tile @ F_tile.T  (f32 accumulate).
# ---------------------------------------------------------------------------
def _gram_tile(f):
    # F @ F.T on the MXU by contracting the lane axis of f with itself:
    # no in-kernel transpose / XLU work / extra VMEM copy.
    dn = (((1,), (1,)), ((), ()))
    return lax.dot_general(f, f, dimension_numbers=dn,
                           preferred_element_type=jnp.float32)


def _accumulate_gram(f_ref, acc_ref, *, tile_idx, num_tiles, k_valid_last, tk,
                     guard_pad_tiles):
    """acc += F_tile @ F_tile.T.  The ragged last K tile is handled by a
    static split: an unmasked [:, :k_full] dot plus one masked <=128-lane
    slab (no full-tile iota/where temporaries).  `guard_pad_tiles` skips
    duplicate tiles produced by an uneven 2-core K split."""
    last = num_tiles - 1

    if k_valid_last == tk:                          # K % tk == 0: never masked
        if not guard_pad_tiles:
            acc_ref[...] += _gram_tile(f_ref[...])
        else:
            @pl.when(tile_idx <= last)
            def _():
                acc_ref[...] += _gram_tile(f_ref[...])
        return

    k_full = (k_valid_last // 128) * 128            # unmasked, 128-aligned prefix
    rem = k_valid_last - k_full                     # masked columns, in [0, 128)

    @pl.when(tile_idx < last)
    def _():
        acc_ref[...] += _gram_tile(f_ref[...])

    @pl.when(tile_idx == last)
    def _():
        part = None
        if k_full > 0:
            part = _gram_tile(f_ref[:, :k_full])
        if rem > 0:
            slab = f_ref[:, k_full:k_full + 128]    # static, lane-aligned slice
            col = lax.broadcasted_iota(jnp.int32, slab.shape, 1)
            slab = jnp.where(col < rem, slab, jnp.zeros_like(slab))
            mpart = _gram_tile(slab)
            part = mpart if part is None else part + mpart
        acc_ref[...] += part
    # Tiles with tile_idx > last (padding tiles of an uneven split) fall into
    # neither branch and contribute nothing.


# ---------------------------------------------------------------------------
# Partial-gram kernel: accumulates directly into the f32 output block
# (block-invariant across the K axis), optionally split across 2 TensorCores.
# ---------------------------------------------------------------------------
def _gram_partial_kernel(f_ref, g_ref, *, inv_norm, nk_total, nk_local,
                         k_valid_last, tk, guard_pad_tiles):
    s = pl.program_id(0)
    k = pl.program_id(1)

    @pl.when(k == 0)
    def _():
        g_ref[...] = jnp.zeros_like(g_ref)

    _accumulate_gram(f_ref, g_ref,
                     tile_idx=s * nk_local + k, num_tiles=nk_total,
                     k_valid_last=k_valid_last, tk=tk,
                     guard_pad_tiles=guard_pad_tiles)

    @pl.when(k == nk_local - 1)
    def _():
        g_ref[...] = g_ref[...] * inv_norm


def _gram_partials(x, *, force_split=None, tile_k=None):
    """Per-split partial gram matrices, shape (n_split, M, M) f32, already
    scaled by 1/(a*b*c*d).  Their sum over axis 0 equals gram_matrix(x)."""
    a, b, c, d = x.shape
    M, K = a * b, c * d
    feats = x.reshape(M, K)                         # native dtype, one HBM pass
    inv_norm = 1.0 / float(a * b * c * d)
    itemsize = feats.dtype.itemsize

    vmem_limit, f_budget, cores = _budgets(M, itemsize, n_resident_mm=2)
    tk = tile_k if tile_k is not None else _choose_tk(M, K, itemsize, f_budget)
    assert tk == K or tk % 128 == 0
    nk = (K + tk - 1) // tk
    rem = K % tk
    k_valid_last = rem if rem else tk

    n_split = force_split if force_split is not None else (2 if cores >= 2 else 1)
    if nk < 2:
        n_split = 1
    nk_local = (nk + n_split - 1) // n_split
    guard_pad = (n_split * nk_local != nk)

    if guard_pad:
        # Clamp duplicate tiles of an uneven split to a valid block index
        # (their contribution is skipped inside the kernel).
        f_index = lambda s, k: (0, jnp.minimum(s * nk_local + k, nk - 1))
    else:
        f_index = lambda s, k: (0, s * nk_local + k)

    kernel = functools.partial(
        _gram_partial_kernel, inv_norm=inv_norm, nk_total=nk,
        nk_local=nk_local, k_valid_last=k_valid_last, tk=tk,
        guard_pad_tiles=guard_pad)

    cost = pl.CostEstimate(
        flops=2 * M * M * K, transcendentals=0,
        bytes_accessed=M * K * itemsize + n_split * M * M * 4)

    return pl.pallas_call(
        kernel,
        out_shape=jax.ShapeDtypeStruct((n_split, M, M), jnp.float32),
        grid=(n_split, nk),
        in_specs=[pl.BlockSpec((M, tk), f_index)],
        out_specs=pl.BlockSpec((None, M, M), lambda s, k: (s, 0, 0)),
        compiler_params=pltpu.CompilerParams(
            dimension_semantics=("parallel", "arbitrary"),
            vmem_limit_bytes=vmem_limit),
        cost_estimate=cost,
    )(feats) if False else pl.pallas_call(
        kernel,
        out_shape=jax.ShapeDtypeStruct((n_split, M, M), jnp.float32),
        grid=(n_split, nk_local),
        in_specs=[pl.BlockSpec((M, tk), f_index)],
        out_specs=pl.BlockSpec((None, M, M), lambda s, k: (s, 0, 0)),
        compiler_params=pltpu.CompilerParams(
            dimension_semantics=("parallel", "arbitrary"),
            vmem_limit_bytes=vmem_limit),
        cost_estimate=cost,
    )(feats)


def gram_matrix(x):
    """Pallas equivalent of the PyTorch gram_matrix(input); returns f32 (M, M)."""
    parts = _gram_partials(x)
    return parts[0] if parts.shape[0] == 1 else jnp.sum(parts, axis=0)


# ---------------------------------------------------------------------------
# Fused gram + MSE kernel (single-TensorCore forward): loss = mean((G - T)^2).
# G is never written to HBM; the scalar loss goes to SMEM.
# ---------------------------------------------------------------------------
def _gram_mse_kernel(f_ref, t_ref, loss_ref, acc_ref, *,
                     inv_norm, inv_mm, nk_total, k_valid_last, tk):
    k = pl.program_id(0)

    @pl.when(k == 0)
    def _():
        acc_ref[...] = jnp.zeros_like(acc_ref)

    _accumulate_gram(f_ref, acc_ref, tile_idx=k, num_tiles=nk_total,
                     k_valid_last=k_valid_last, tk=tk, guard_pad_tiles=False)

    @pl.when(k == nk_total - 1)
    def _():
        g = acc_ref[...] * inv_norm
        diff = g - t_ref[...].astype(jnp.float32)
        loss_ref[0, 0] = jnp.sum(diff * diff) * inv_mm


def style_mse_loss(x, target_gram, *, split=None):
    """loss = mean((gram(x) - target_gram)^2).

    split=None: auto — 2-TensorCore K split on v7x-class chips, fused
    single-pass kernel (scalar loss straight from SMEM) otherwise."""
    a, b, c, d = x.shape
    M, K = a * b, c * d
    inv_norm = 1.0 / float(a * b * c * d)
    inv_mm = 1.0 / float(M * M)

    if split is None:
        _, cores = _tpu_info()
        split = (cores >= 2) and (K > 128)

    if split:
        # v7x path: each TensorCore accumulates a partial gram over half of K
        # (halves per-core HBM traffic); the tiny (2,M,M) combine + MSE is
        # plain JAX.
        parts = _gram_partials(x, force_split=2)
        g = jnp.sum(parts, axis=0) if parts.shape[0] > 1 else parts[0]
        diff = g - target_gram.astype(jnp.float32)
        return jnp.mean(diff * diff)

    feats = x.reshape(M, K)                         # native dtype, one HBM pass
    itemsize = feats.dtype.itemsize
    vmem_limit, f_budget, _ = _budgets(M, itemsize, n_resident_mm=3)
    tk = _choose_tk(M, K, itemsize, f_budget)
    nk = (K + tk - 1) // tk
    rem = K % tk
    k_valid_last = rem if rem else tk

    kernel = functools.partial(
        _gram_mse_kernel, inv_norm=inv_norm, inv_mm=inv_mm,
        nk_total=nk, k_valid_last=k_valid_last, tk=tk)

    cost = pl.CostEstimate(
        flops=2 * M * M * K, transcendentals=0,
        bytes_accessed=M * K * itemsize + M * M * target_gram.dtype.itemsize + 4)

    loss = pl.pallas_call(
        kernel,
        out_shape=jax.ShapeDtypeStruct((1, 1), jnp.float32),
        grid=(nk,),
        in_specs=[pl.BlockSpec((M, tk), lambda k: (0, k)),
                  pl.BlockSpec((M, M), lambda k: (0, 0))],   # resident target
        out_specs=pl.BlockSpec(memory_space=pltpu.MemorySpace.SMEM),
        scratch_shapes=[pltpu.VMEM((M, M), jnp.float32)],
        compiler_params=pltpu.CompilerParams(
            dimension_semantics=("arbitrary",),
            vmem_limit_bytes=vmem_limit),
        cost_estimate=cost,
    )(feats, target_gram)
    return loss[0, 0]


# ---------------------------------------------------------------------------
# StyleLoss "module": target gram fixed at init; forward returns its input
# unchanged and records self.loss (exactly like the PyTorch module).
# ---------------------------------------------------------------------------
class StyleLoss:
    def __init__(self, target_feature):
        self.target = gram_matrix(target_feature)   # detached by construction
        self.loss = None

    def __call__(self, x):
        self.loss = style_mse_loss(x, self.target)
        return x


# ---------------------------------------------------------------------------
# Pure-JAX reference for correctness checks.
# ---------------------------------------------------------------------------
def _gram_ref(v):
    a, b, c, d = v.shape
    f = v.reshape(a * b, c * d).astype(jnp.float32)
    return (f @ f.T) / (a * b * c * d)


if __name__ == "__main__":
    key = jax.random.PRNGKey(0)
    k_tgt, k_in, k_r1, k_r2 = jax.random.split(key, 4)

    # --- main module-shaped test: batch=2, channels=4, spatial=16x16 -------
    target_feature = jax.random.normal(k_tgt, (2, 4, 16, 16), dtype=jnp.float32)
    x = jax.random.normal(k_in, (2, 4, 16, 16), dtype=jnp.float32)

    style = StyleLoss(target_feature)
    out = jax.block_until_ready(style(x))
    loss = jax.block_until_ready(style.loss)

    g_ref = _gram_ref(x)
    t_ref = _gram_ref(target_feature)
    loss_ref = jnp.mean((g_ref - t_ref) ** 2)

    assert out.shape == x.shape
    assert jnp.allclose(out, x)
    assert jnp.allclose(loss, loss_ref, rtol=1e-5, atol=1e-6), (loss, loss_ref)

    # --- exercise both loss paths regardless of chip generation ------------
    tgram = gram_matrix(target_feature)
    for use_split in (False, True):
        l = jax.block_until_ready(style_mse_loss(x, tgram, split=use_split))
        assert jnp.allclose(l, loss_ref, rtol=1e-5, atol=1e-6), (use_split, l)

    # --- ragged last K tile (K=130 -> tk=128, masked 2-column remainder) ---
    xr = jax.random.normal(k_r1, (1, 4, 10, 13), dtype=jnp.float32)
    gr = jax.block_until_ready(gram_matrix(xr))
    assert jnp.allclose(gr, _gram_ref(xr), rtol=1e-5, atol=1e-5)

    # --- ragged tile with unmasked 128-prefix + masked remainder, 2-way split
    xp = jax.random.normal(k_r2, (1, 2, 18, 23), dtype=jnp.float32)  # K = 414
    pp = _gram_partials(xp, force_split=2, tile_k=256)
    gp = jax.block_until_ready(jnp.sum(pp, axis=0))
    assert jnp.allclose(gp, _gram_ref(xp), rtol=1e-5, atol=1e-5)

    print("KERNEL_OK")
</pallas_src>

<mosaic_0001>
module attributes {stable_mosaic.version = 11 : i64} {
  func.func @_gram_partial_kernel(%arg0: i32, %arg1: i32, %arg2: memref<8x128xf32, #tpu.memory_space<vmem>>, %arg3: memref<1x8x8xf32, #tpu.memory_space<vmem>>) attributes {dimension_semantics = [#tpu.dimension_semantics<parallel>, #tpu.dimension_semantics<arbitrary>], iteration_bounds = array<i64: 1, 2>, scalar_prefetch = 0 : i64, scratch_operands = 0 : i64, tpu.core_type = #tpu.core_type<tc>, window_params = [{transform_indices = @transform_0, window_bounds = array<i64: 8, 128>}, {transform_indices = @transform_1, window_bounds = array<i64: 1, 8, 8>}]} {
    %c0_i32 = arith.constant 0 : i32
    %0 = arith.cmpi eq, %arg1, %c0_i32 : i32
    %1 = arith.extui %0 : i1 to i32
    %c0_i32_0 = arith.constant 0 : i32
    %2 = arith.cmpi ne, %1, %c0_i32_0 : i32
    scf.if %2 {
      %cst_9 = arith.constant 0.000000e+00 : f32
      %14 = vector.broadcast %cst_9 : f32 to vector<8x8xf32>
      %c0_10 = arith.constant 0 : index
      %c0_11 = arith.constant 0 : index
      %c0_12 = arith.constant 0 : index
      %15 = vector.load %arg3[%c0_10, %c0_11, %c0_12] : memref<1x8x8xf32, #tpu.memory_space<vmem>>, vector<1x8x8xf32>
      %16 = vector.shape_cast %15 : vector<1x8x8xf32> to vector<8x8xf32>
      %17 = vector.shape_cast %14 : vector<8x8xf32> to vector<1x8x8xf32>
      tpu.vector_store %arg3[%c0_10, %c0_11, %c0_12], %17 {strides = array<i32>} : memref<1x8x8xf32, #tpu.memory_space<vmem>>, vector<1x8x8xf32>,
    } else {
    }
    %c0 = arith.constant 0 : index
    %c0_1 = arith.constant 0 : index
    %c0_2 = arith.constant 0 : index
    %3 = vector.load %arg3[%c0, %c0_1, %c0_2] : memref<1x8x8xf32, #tpu.memory_space<vmem>>, vector<1x8x8xf32>
    %4 = vector.shape_cast %3 : vector<1x8x8xf32> to vector<8x8xf32>
    %c0_3 = arith.constant 0 : index
    %c0_4 = arith.constant 0 : index
    %5 = vector.load %arg2[%c0_3, %c0_4] : memref<8x128xf32, #tpu.memory_space<vmem>>, vector<8x128xf32>
    %cst = arith.constant dense<0.000000e+00> : vector<8x8xf32>
    %6 = tpu.matmul %5, %5, %cst {dimension_numbers = #tpu.dot_dimension_numbers<[1], [1], [0], [0], [0, 0, 1, 0], [], []>} : vector<8x128xf32>, vector<8x128xf32>, vector<8x8xf32> -> vector<8x8xf32>
    %7 = arith.addf %4, %6 : vector<8x8xf32>
    %c0_5 = arith.constant 0 : index
    %c0_6 = arith.constant 0 : index
    %c0_7 = arith.constant 0 : index
    %8 = vector.load %arg3[%c0_5, %c0_6, %c0_7] : memref<1x8x8xf32, #tpu.memory_space<vmem>>, vector<1x8x8xf32>
    %9 = vector.shape_cast %8 : vector<1x8x8xf32> to vector<8x8xf32>
    %10 = vector.shape_cast %7 : vector<8x8xf32> to vector<1x8x8xf32>
    tpu.vector_store %arg3[%c0_5, %c0_6, %c0_7], %10 {strides = array<i32>} : memref<1x8x8xf32, #tpu.memory_space<vmem>>, vector<1x8x8xf32>,
    %c1_i32 = arith.constant 1 : i32
    %11 = arith.cmpi eq, %arg1, %c1_i32 : i32
    %12 = arith.extui %11 : i1 to i32
    %c0_i32_8 = arith.constant 0 : i32
    %13 = arith.cmpi ne, %12, %c0_i32_8 : i32
    scf.if %13 {
      %c0_9 = arith.constant 0 : index
      %c0_10 = arith.constant 0 : index
      %c0_11 = arith.constant 0 : index
      %14 = vector.load %arg3[%c0_9, %c0_10, %c0_11] : memref<1x8x8xf32, #tpu.memory_space<vmem>>, vector<1x8x8xf32>
      %15 = vector.shape_cast %14 : vector<1x8x8xf32> to vector<8x8xf32>
      %cst_12 = arith.constant 4.8828125E-4 : f32
      %16 = vector.broadcast %cst_12 : f32 to vector<8x8xf32>
      %17 = arith.mulf %15, %16 : vector<8x8xf32>
      %c0_13 = arith.constant 0 : index
      %c0_14 = arith.constant 0 : index
      %c0_15 = arith.constant 0 : index
      %18 = vector.load %arg3[%c0_13, %c0_14, %c0_15] : memref<1x8x8xf32, #tpu.memory_space<vmem>>, vector<1x8x8xf32>
      %19 = vector.shape_cast %18 : vector<1x8x8xf32> to vector<8x8xf32>
      %20 = vector.shape_cast %17 : vector<8x8xf32> to vector<1x8x8xf32>
      tpu.vector_store %arg3[%c0_13, %c0_14, %c0_15], %20 {strides = array<i32>} : memref<1x8x8xf32, #tpu.memory_space<vmem>>, vector<1x8x8xf32>,
    } else {
    }
    return
  }
  func.func @transform_0(%arg0: i32, %arg1: i32) -> (i32, i32) {
    %c2_i32 = arith.constant 2 : i32
    %0 = arith.muli %arg0, %c2_i32 : i32
    %1 = arith.addi %0, %arg1 : i32
    %c0_i32 = arith.constant 0 : i32
    %c0_i32_0 = arith.constant 0 : i32
    return %c0_i32, %1 : i32, i32
  }
  func.func @transform_1(%arg0: i32, %arg1: i32) -> (i32, i32, i32) {
    %c0_i32 = arith.constant 0 : i32
    %c0_i32_0 = arith.constant 0 : i32
    %c0_i32_1 = arith.constant 0 : i32
    return %arg0, %c0_i32, %c0_i32_0 : i32, i32, i32
  }
}

</mosaic_0001>

<llo_original>
// kernel: tpu_custom_call.1
$region0: #{tpu_custom_call.1}
  #allocation0 [shape = 'u32[]', space=smem, size = 0x4, offset = 0x4, fixed_abs, tag = 'smem constant byte address 0x4 - core index']
  #allocation1 [shape = 'u32[144,128]{1,0:T(1,128)}', space=vmem, size = 0x12000, scoped, tag = 'internal scratch']
  %s0 = inlined_call_operand.hbm [shape: f32[8,256], index: 0, kind: input, shape index: {}]
  %s1 = inlined_call_operand.hbm [shape: f32[1,8,8], index: 1, kind: output, shape index: {}]
  %s2 = sld [smem:[#allocation0]]
  $region49: #{tpu_custom_call.1} parent=0
    _
  %s4 = ssub.s32 1, %s2
  %s5 = scalar_select 0, %s4, %s2
  $region1: #{tpu_custom_call.1} parent=0
    #allocation2 [shape = 'u8[8192]{0}', space=vmem, size = 0x2000, scoped, tag = 'input window, operand 0']
    #allocation3 [shape = 's32[2]{0}', space=sflag, size = 0x8, scoped, tag = 'scoped memory for tpu_custom_call.1']
    #allocation4 [shape = 's32[2]{0}', space=sflag, size = 0x8, scoped, tag = 'scoped memory for tpu_custom_call.1']
    #allocation5 [shape = 'u8[4096]{0}', space=vmem, size = 0x1000, scoped, tag = 'output window, operand 0, single buffered']
    %6 = vsyncpa [#allocation3], 0
    %s7 = scalar_lea.sflag [#allocation3], 1
    %8 = vsyncpa %s7, 0
    %9 = vsyncpa [#allocation4], 0
    loop: start=0, step=1, limit=4
    $region2: #{tpu_custom_call.1} parent=1 // loop_pre_header
      _
    $region3: #{tpu_custom_call.1} parent=1 // loop_header
      %s11 = sphi 0, %s15
      %p12 = scmp.ge.s32.totalorder %s11, 4
      %s18 = sphi 0, %s30
      %s19 = sphi 0, %s26
      %s20 = sphi 0, %s18
      %s21 = sphi 0, %s19
      %s22 = sphi 0, %s20
      %s23 = sphi 0, %s21
      %s37 = sphi 0, %s39
      %s40 = sphi 0, %s37
      %s41 = sphi 0, %s40
      %s57 = sphi 0, %s41
      %s63 = sphi 0, %s65
      %s66 = sphi 0, %s63
      %s67 = sphi 0, %s66
      %s83 = sphi 0, %s67
    $region4: #{tpu_custom_call.1} parent=1 // loop_header_branch
      %14 = sbr.rel (%p12) target = $region8
    $region5: #{tpu_custom_call.1} parent=1 // loop_body
      %s16 = ssub.s32 %s11, 1
      %s17 = ssub.s32 %s11, 2
      %s24 = sadd.s32 1, %s19
      %p25 = scmp.ge.s32.totalorder %s24, 2
      %s26 = scalar_select %p25, 0, %s24
      %s27 = sadd.s32 1, %s18
      %s28 = scalar_select %p25, %s27, %s18
      %p29 = scmp.ge.s32.totalorder %s28, 1
      %s30 = scalar_select %p29, 0, %s28
      %s31 = smul.u32 %s18, 2
      %s32 = sadd.s32 %s31, %s19
      %s33 = smul.u32 %s30, 2
      %s34 = sadd.s32 %s33, %s26
      %s35 = ssub.s32 %s32, %s34
      %p36 = scmp.eq.s32.totalorder %s35, 0
      %s38 = sadd.s32 %s37, 1
      %s39 = scalar_select %p36, %s37, %s38
      %p42 = pneg %p36
      %p43 = scmp.eq.s32.totalorder %s11, 1
      %p44 = por %p42, %p43
      %p45 = scmp.ne.s32.totalorder %s37, %s40
      %p46 = scmp.eq.s32.totalorder %s11, 0
      %p47 = por %p45, %p46
      %p48 = scmp.ne.s32.totalorder %s37, %s40
      %p49 = scmp.eq.s32.totalorder %s16, 1
      %p50 = por %p48, %p49
      %p51 = scmp.ne.s32.totalorder %s40, %s41
      %p52 = scmp.eq.s32.totalorder %s16, 0
      %p53 = por %p51, %p52
      %p54 = scmp.ne.s32.totalorder %s40, %s41
      %p55 = scmp.eq.s32.totalorder %s17, 1
      %p56 = por %p54, %p55
      %p58 = scmp.ne.s32.totalorder %s41, %s57
      %p59 = scmp.eq.s32.totalorder %s17, 0
      %p60 = por %p58, %p59
      %s61 = ssub.s32 %s18, %s30
      %p62 = scmp.eq.s32.totalorder %s61, 0
      %s64 = sadd.s32 %s63, 1
      %s65 = scalar_select %p62, %s63, %s64
      %p68 = pneg %p62
      %p69 = scmp.eq.s32.totalorder %s11, 1
      %p70 = por %p68, %p69
      %p71 = scmp.ne.s32.totalorder %s63, %s66
      %p72 = scmp.eq.s32.totalorder %s11, 0
      %p73 = por %p71, %p72
      %p74 = scmp.ne.s32.totalorder %s63, %s66
      %p75 = scmp.eq.s32.totalorder %s16, 1
      %p76 = por %p74, %p75
      %p77 = scmp.ne.s32.totalorder %s66, %s67
      %p78 = scmp.eq.s32.totalorder %s16, 0
      %p79 = por %p77, %p78
      %p80 = scmp.ne.s32.totalorder %s66, %s67
      %p81 = scmp.eq.s32.totalorder %s17, 1
      %p82 = por %p80, %p81
      %p84 = scmp.ne.s32.totalorder %s67, %s83
      %p85 = scmp.eq.s32.totalorder %s17, 0
      %p86 = por %p84, %p85
      %p87 = scmp.le.s32.totalorder 1, %s11
      %p88 = scmp.lt.s32.totalorder %s11, 3
      %p89 = pnand %p87, %p88
      %p90 = pneg %p89
      // Predicated region
      $region9: #{tpu_custom_call.1} parent=5 // pred_check
        _
      $region10: #{tpu_custom_call.1} parent=5 // pred_check_branch
        %92 = sbr.rel (%p89) target = $region12
      $region11: #{tpu_custom_call.1} parent=5 // pred_region
        %s93 = ssub.s32 %s11, 1
      $region12: #{tpu_custom_call.1} parent=5 // pred_fallthru
        _
      %p94 = scmp.lt.s32.totalorder %s11, 2
      // Predicated region
      $region13: #{tpu_custom_call.1} parent=5 // pred_check
        %p95 = pneg %p94
      $region14: #{tpu_custom_call.1} parent=5 // pred_check_branch
        %97 = sbr.rel (%p95) target = $region16
      $region15: #{tpu_custom_call.1} parent=5 // pred_region
        // Predicated region
        $region17: #{tpu_custom_call.1} parent=15 // pred_check
          %p98 = pneg %p47
        $region18: #{tpu_custom_call.1} parent=15 // pred_check_branch
          %100 = sbr.rel (%p98) target = $region20
        $region19: #{tpu_custom_call.1} parent=15 // pred_region
          %s101 = sand.u32 %s37, 1
          %s102 = scalar_lea.sflag [#allocation3], %s101
          %s103 = sand.u32 %s37, 1
          %s104 = smul.addr %s103, 8
          %s105 = scalar_lea.vmem [#allocation2], %s104
          %s106 = smul.u32 %s18, 2
          %s107 = sadd.s32 %s106, %s19
          %s109 = ssub.s32 128, 128
          %110 = vsyncadd %s102, %s109
          %s111 = smul.addr %s107, 128
          %s112 = scalar_lea.hbm %s0, %s111
          %s114 = sshll.u32 %s105, 4
          %s115 = int_to_ptr.vmem [resolvable:$true] %s114
          %117 = dma.hbm_to_vmem [thread:$0]  %s112, 128, %s115, %s102
        $region20: #{tpu_custom_call.1} parent=15 // pred_fallthru
          _
      $region16: #{tpu_custom_call.1} parent=5 // pred_fallthru
        _
      %p118 = scmp.le.s32.totalorder 1, %s11
      %p119 = scmp.lt.s32.totalorder %s11, 3
      %p120 = pnand %p118, %p119
      %p121 = pneg %p120
      // Predicated region
      $region21: #{tpu_custom_call.1} parent=5 // pred_check
        _
      $region22: #{tpu_custom_call.1} parent=5 // pred_check_branch
        %123 = sbr.rel (%p120) target = $region24
      $region23: #{tpu_custom_call.1} parent=5 // pred_region
        %s124 = ssub.s32 %s11, 1
        %s125 = sand.u32 %s40, 1
        %s126 = scalar_lea.sflag [#allocation3], %s125
        %s127 = sand.u32 %s40, 1
        %s128 = smul.addr %s127, 8
        %s129 = scalar_lea.vmem [#allocation2], %s128
        // Predicated region
        $region25: #{tpu_custom_call.1} parent=23 // pred_check
          %p130 = pneg %p53
        $region26: #{tpu_custom_call.1} parent=23 // pred_check_branch
          %132 = sbr.rel (%p130) target = $region28
        $region27: #{tpu_custom_call.1} parent=23 // pred_region
          %133 = dma.done %s126, 128
        $region28: #{tpu_custom_call.1} parent=23 // pred_fallthru
          _
        %s134 = sand.u32 %s40, 1
        %s135 = scalar_lea.sflag [#allocation3], %s134
        %s136 = sand.u32 %s40, 1
        %s137 = smul.addr %s136, 8
        %s138 = scalar_lea.vmem [#allocation2], %s137
        %p139 = pneg %p53
        %p140 = pneg %p50
        %p141 = pneg %p79
        %p142 = pneg %p76
        %s143 = smul.u32 %s20, 2
        %s144 = sadd.s32 %s143, %s21
        %p145 = scmp.eq.s32.totalorder %s21, 0
        // Predicated region
        $region29: #{tpu_custom_call.1} parent=23 // pred_check
          %p146 = pneg %p145
        $region30: #{tpu_custom_call.1} parent=23 // pred_check_branch
          %148 = sbr.rel (%p146) target = $region32
        $region31: #{tpu_custom_call.1} parent=23 // pred_region
          %vm149 = vcmask 64512
          %150 = vst.msk [vmem:[#allocation5] sm:$0xff] %vm149, 0.0
        $region32: #{tpu_custom_call.1} parent=23 // pred_fallthru
          _
        %v151 = vld [vmem:[#allocation5] sm:$0xff]
        %v152 = vld [vmem:[%s129] sm:$0xff]
        %153 = vmatprep.subr.mxu0 0.0
        %154 = vmatpush1.xpose.msra.mxu0 %v152
        %155 = vmatprep.subr.mxu0 0.0
        %156 = vmatpush1.xpose.msra.mxu0 0.0
        %157 = vmatprep.subr.mxu0 0.0
        %158 = vmatpush1.xpose.msra.mxu0 0.0
        %159 = vmatprep.subr.mxu0 0.0
        %160 = vmatpush1.xpose.msra.mxu0 0.0
        %161 = vmatprep.subr.mxu0 0.0
        %162 = vmatpush1.xpose.msra.mxu0 0.0
        %163 = vmatprep.subr.mxu0 0.0
        %164 = vmatpush1.xpose.msra.mxu0 0.0
        %165 = vmatprep.subr.mxu0 0.0
        %166 = vmatpush1.xpose.msra.mxu0 0.0
        %167 = vmatprep.subr.mxu0 0.0
        %168 = vmatpush1.xpose.msra.mxu0 0.0
        %169 = vmatprep.subr.mxu0 0.0
        %170 = vmatpush1.xpose.msra.mxu0 0.0
        %171 = vmatprep.subr.mxu0 0.0
        %172 = vmatpush1.xpose.msra.mxu0 0.0
        %173 = vmatprep.subr.mxu0 0.0
        %174 = vmatpush1.xpose.msra.mxu0 0.0
        %175 = vmatprep.subr.mxu0 0.0
        %176 = vmatpush1.xpose.msra.mxu0 0.0
        %177 = vmatprep.subr.mxu0 0.0
        %178 = vmatpush1.xpose.msra.mxu0 0.0
        %179 = vmatprep.subr.mxu0 0.0
        %180 = vmatpush1.xpose.msra.mxu0 0.0
        %181 = vmatprep.subr.mxu0 0.0
        %182 = vmatpush1.xpose.msra.mxu0 0.0
        %183 = vmatprep.subr.mxu0 0.0
        %184 = vmatpush1.xpose.msra.mxu0 0.0
        %185 = vmatprep.subr.mxu0 0.0
        %186 = vmatpush1.xpose.msra.mxu0 0.0
        %187 = vmatprep.subr.mxu0 0.0
        %188 = vmatpush1.xpose.msra.mxu0 0.0
        %189 = vmatprep.subr.mxu0 0.0
        %190 = vmatpush1.xpose.msra.mxu0 0.0
        %191 = vmatprep.subr.mxu0 0.0
        %192 = vmatpush1.xpose.msra.mxu0 0.0
        %193 = vmatprep.subr.mxu0 0.0
        %194 = vmatpush1.xpose.msra.mxu0 0.0
        %195 = vmatprep.subr.mxu0 0.0
        %196 = vmatpush1.xpose.msra.mxu0 0.0
        %197 = vmatprep.subr.mxu0 0.0
        %198 = vmatpush1.xpose.msra.mxu0 0.0
        %199 = vmatprep.subr.mxu0 0.0
        %200 = vmatpush1.xpose.msra.mxu0 0.0
        %201 = vmatprep.subr.mxu0 0.0
        %202 = vmatpush1.xpose.msra.mxu0 0.0
        %203 = vmatprep.subr.mxu0 0.0
        %204 = vmatpush1.xpose.msra.mxu0 0.0
        %205 = vmatprep.subr.mxu0 0.0
        %206 = vmatpush1.xpose.msra.mxu0 0.0
        %207 = vmatprep.subr.mxu0 0.0
        %208 = vmatpush1.xpose.msra.mxu0 0.0
        %209 = vmatprep.subr.mxu0 0.0
        %210 = vmatpush1.xpose.msra.mxu0 0.0
        %211 = vmatprep.subr.mxu0 0.0
        %212 = vmatpush1.xpose.msra.mxu0 0.0
        %213 = vmatprep.subr.mxu0 0.0
        %214 = vmatpush1.xpose.msra.mxu0 0.0
        %215 = vmatprep.subr.mxu0 0.0
        %216 = vmatpush1.xpose.msra.mxu0 0.0
        %217 = vmatprep.mubr.f32.mxu0 0.0
        %218 = vmatmul.mubr.f32.gmra.mrb[0].mxu0 %v152
        %v219 = vpop.f32.mrb[0].mxu0
        %v220 = vadd.f32 0.0, %v219
        %v221 = vpop.f32.mrb[0].mxu0
        %222 = vdwg.mxu0
        %v223 = vadd.f32 %v151, %v220
        %vm224 = vcmask 64512
        %225 = vst.msk [vmem:[#allocation5] sm:$0xff] %vm224, %v223
        %p226 = scmp.eq.s32.totalorder %s21, 1
        // Predicated region
        $region33: #{tpu_custom_call.1} parent=23 // pred_check
          %p227 = pneg %p226
        $region34: #{tpu_custom_call.1} parent=23 // pred_check_branch
          %229 = sbr.rel (%p227) target = $region36
        $region35: #{tpu_custom_call.1} parent=23 // pred_region
          %v230 = vld [vmem:[#allocation5] sm:$0xff]
          %v231 = vmul.f32 %v230, 0.00048828125
          %232 = vst.msk [vmem:[#allocation5] sm:$0xff] %vm224, %v231
        $region36: #{tpu_custom_call.1} parent=23 // pred_fallthru
          _
        // Predicated region
        $region37: #{tpu_custom_call.1} parent=23 // pred_check
          %p233 = pneg %p76
        $region38: #{tpu_custom_call.1} parent=23 // pred_check_branch
          %235 = sbr.rel (%p233) target = $region40
        $region39: #{tpu_custom_call.1} parent=23 // pred_region
          %s237 = ssub.s32 128, 128
          %238 = vsyncadd [#allocation4], %s237
          %s239 = smul.addr %s20, 128
          %s240 = scalar_lea.hbm %s1, %s239
          %s242 = sshll.u32 [#allocation5], 4
          %s243 = int_to_ptr.vmem [resolvable:$true] %s242
          %245 = dma.vmem_to_hbm [thread:$0]  %s243, 128, %s240, [#allocation4]
        $region40: #{tpu_custom_call.1} parent=23 // pred_fallthru
          _
        // Predicated region
        $region41: #{tpu_custom_call.1} parent=23 // pred_check
          %p246 = pneg %p76
        $region42: #{tpu_custom_call.1} parent=23 // pred_check_branch
          %248 = sbr.rel (%p246) target = $region44
        $region43: #{tpu_custom_call.1} parent=23 // pred_region
          %249 = dma.done [#allocation4], 128
        $region44: #{tpu_custom_call.1} parent=23 // pred_fallthru
          _
      $region24: #{tpu_custom_call.1} parent=5 // pred_fallthru
        _
      %p250 = scmp.le.s32.totalorder 2, %s11
      // Predicated region
      $region45: #{tpu_custom_call.1} parent=5 // pred_check
        %p251 = pneg %p250
      $region46: #{tpu_custom_call.1} parent=5 // pred_check_branch
        %253 = sbr.rel (%p251) target = $region48
      $region47: #{tpu_custom_call.1} parent=5 // pred_region
        %s254 = ssub.s32 %s11, 2
      $region48: #{tpu_custom_call.1} parent=5 // pred_fallthru
        _
    $region6: #{tpu_custom_call.1} parent=1 // loop_footer
      %s15 = sadd.s32 1, %s11
    $region7: #{tpu_custom_call.1} parent=1 // loop_footer_branch
      %10 = sbr.rel target = $region3
    $region8: #{tpu_custom_call.1} parent=1 // loop_exit
      _
    %255 = vsyncpa [#allocation3], 1
    %s256 = scalar_lea.sflag [#allocation3], 1
    %257 = vsyncpa %s256, 1
    %258 = vsyncpa [#allocation4], 1
    %s259 = scalar_lea.sflag [#allocation4], 1
    %260 = vsyncpa %s259, 1

</llo_original>
